<compile_context>
chip_gen: v5e
topology: v5e:2x2
jax: 0.10.0
libtpu: 0.0.40
codegen_flags: <defaults>
</compile_context>

<pallas_src>
import functools
import math

import numpy as np
import jax
import jax.numpy as jnp
from jax.experimental import pallas as pl
from jax.experimental.pallas import tpu as pltpu

_AXIS_TO_IDX = {"X": 0, "Y": 1, "Z": 2}
_LANE = 128
_SUB = 16  # sublane rounding; multiple of 16 keeps 16-bit input blocks tile-aligned


def _round_up(x, n):
    return n * ((x + n - 1) // n)


def _validate_convention(convention):
    if len(convention) != 3:
        raise ValueError("Convention must have 3 letters.")
    if convention[1] in (convention[0], convention[2]):
        raise ValueError(f"Invalid convention {convention}.")
    for letter in convention:
        if letter not in ("X", "Y", "Z"):
            raise ValueError(f"Invalid letter {letter} in convention string.")


def _angle_from_tan_config(axis, other_axis, flat_index_fn, horizontal, tait_bryan):
    """Trace-time mirror of RotMatToEuler._angle_from_tan.

    Returns (numerator_flat_idx, numerator_sign, denominator_flat_idx, denominator_sign).
    """
    i1, i2 = {"X": (2, 1), "Y": (0, 2), "Z": (1, 0)}[axis]
    if horizontal:
        i2, i1 = i1, i2
    even = (axis + other_axis) in ("XY", "YZ", "ZX")
    if horizontal == even:
        return flat_index_fn(i1), 1.0, flat_index_fn(i2), 1.0
    if tait_bryan:
        return flat_index_fn(i2), -1.0, flat_index_fn(i1), 1.0
    return flat_index_fn(i2), 1.0, flat_index_fn(i1), -1.0


def _make_plan(convention, degrees):
    """Resolve the convention at trace time into (needed_flat_entries, kernel)."""
    _validate_convention(convention)
    i0 = _AXIS_TO_IDX[convention[0]]
    i2 = _AXIS_TO_IDX[convention[2]]
    tait_bryan = i0 != i2
    if tait_bryan:
        central_idx = 3 * i0 + i2
        central_sign = -1.0 if (i0 - i2) in (-1, 2) else 1.0
    else:
        central_idx = 3 * i0 + i0
        central_sign = 1.0

    # first angle reads column i2 of the matrix: data[k] = matrix[k, i2] -> flat 3*k + i2
    n0, sn0, d0, sd0 = _angle_from_tan_config(
        convention[0], convention[1], lambda k: 3 * k + i2, False, tait_bryan
    )
    # third angle reads row i0 of the matrix: data[k] = matrix[i0, k] -> flat 3*i0 + k
    n2, sn2, d2, sd2 = _angle_from_tan_config(
        convention[2], convention[1], lambda k: 3 * i0 + k, True, tait_bryan
    )

    needed = tuple(sorted({n0, d0, central_idx, n2, d2}))
    pos = {f: p for p, f in enumerate(needed)}

    # Module negates only in the degrees branch; fold numerator signs into the
    # per-channel output scale (atan2/asin are odd in their first argument).
    base = (-180.0 / math.pi) if degrees else 1.0
    ch_scale = (
        base * sn0,
        base * (central_sign if tait_bryan else 1.0),
        base * sn2,
    )

    def _scaled(v, s):
        if s == 1.0:
            return v
        if s == -1.0:
            return -v
        return v * s

    def kernel(x_ref, o_ref):
        # x_ref: (P, TS, 128) needed matrix-entry planes; o_ref: (3, TS, 128) angles.
        def plane(flat_idx):
            return x_ref[pos[flat_idx]].astype(jnp.float32)  # dense (TS, 128) tile

        den0 = plane(d0) if sd0 > 0 else -plane(d0)
        a_first = jnp.arctan2(plane(n0), den0)

        c = plane(central_idx)
        # clamp guards against |c| > 1 float noise from imperfect rotation matrices
        root = jnp.sqrt(jnp.maximum((1.0 - c) * (1.0 + c), 0.0))
        if tait_bryan:
            a_central = jnp.arctan2(c, root)      # == asin(c)
        else:
            a_central = jnp.arctan2(root, c)      # == acos(c)

        den2 = plane(d2) if sd2 > 0 else -plane(d2)
        a_third = jnp.arctan2(plane(n2), den2)

        # Per-plane lane-dense stores; sign flips + (-rad2deg) folded into the scales.
        o_ref[0] = _scaled(a_first, ch_scale[0])
        o_ref[1] = _scaled(a_central, ch_scale[1])
        o_ref[2] = _scaled(a_third, ch_scale[2])

    return needed, kernel


def rotmat_to_euler(rotmat, convention="XYZ", degrees=True, tile_s=1024):
    """Pallas implementation of RotMatToEuler.forward.  rotmat: (..., 9) -> (..., 3)."""
    assert rotmat.shape[-1] == 9
    lead = rotmat.shape[:-1]
    m = int(np.prod(lead)) if lead else 1

    needed, kernel = _make_plan(convention, degrees)
    n_planes = len(needed)

    # Keep 16-bit inputs 16-bit on the wire (bandwidth win, esp. v5e); upcast in-kernel.
    if rotmat.dtype in (jnp.float32, jnp.bfloat16, jnp.float16):
        in_dtype = rotmat.dtype
    else:
        in_dtype = jnp.float32

    # Sublane-row count (each row = 128 matrices on lanes), rounded to a multiple of 16.
    sp = _round_up(pl.cdiv(m, _LANE), _SUB)
    nsteps = pl.cdiv(sp, tile_s)
    if nsteps == 1 and sp >= 2 * _SUB:
        nsteps = 2
    if nsteps > 1 and nsteps % 2:
        nsteps += 1  # even step count -> balanced split across v7x's two TensorCores
    ts = _round_up(pl.cdiv(sp, nsteps), _SUB)
    sp_pad = nsteps * ts
    mp = sp_pad * _LANE

    # Gather only the needed entries and lay them out plane-major (P, Sp, 128).
    # Padded matrices contribute atan2(0,0)=0 / atan2(0,1)=0 -> finite, discarded.
    x = rotmat.reshape(m, 9)
    if x.dtype != in_dtype:
        x = x.astype(in_dtype)
    if mp != m:
        x = jnp.pad(x, ((0, mp - m), (0, 0)))
    x = x[:, list(needed)].T.reshape(n_planes, sp_pad, _LANE)

    itemsize = jnp.dtype(in_dtype).itemsize
    cost = pl.CostEstimate(
        flops=384 * mp,                              # ~3 atan2 polynomials + fixups
        transcendentals=4 * mp,                      # 3x atan2 + 1x sqrt per matrix
        bytes_accessed=(n_planes * itemsize + 3 * 4) * mp,
    )

    out = pl.pallas_call(
        kernel,
        out_shape=jax.ShapeDtypeStruct((3, sp_pad, _LANE), jnp.float32),
        grid=(nsteps,),
        in_specs=[pl.BlockSpec((n_planes, ts, _LANE), lambda i: (0, i, 0))],
        out_specs=pl.BlockSpec((3, ts, _LANE), lambda i: (0, i, 0)),
        compiler_params=pltpu.CompilerParams(
            dimension_semantics=("parallel",),
            vmem_limit_bytes=32 * 1024 * 1024,
        ),
        cost_estimate=cost,
    )(x)

    # TODO(synk): consumers that can take the channel-major (3, ...) layout should,
    # to avoid this final read+write pass over the output.
    out = out.reshape(3, mp)[:, :m].T
    return out.reshape(lead + (3,))


# ---------------- pure-JAX reference (mirrors the torch module) ----------------
def _ref_rotmat_to_euler(rotmat, convention="XYZ", degrees=True):
    matrix = rotmat.reshape(rotmat.shape[:-1] + (3, 3))
    i0 = _AXIS_TO_IDX[convention[0]]
    i2 = _AXIS_TO_IDX[convention[2]]
    tait_bryan = i0 != i2
    if tait_bryan:
        central = jnp.arcsin(matrix[..., i0, i2] * (-1.0 if (i0 - i2) in (-1, 2) else 1.0))
    else:
        central = jnp.arccos(matrix[..., i0, i0])

    def angle_from_tan(axis, other_axis, data, horizontal):
        a1, a2 = {"X": (2, 1), "Y": (0, 2), "Z": (1, 0)}[axis]
        if horizontal:
            a2, a1 = a1, a2
        even = axis + other_axis in ["XY", "YZ", "ZX"]
        if horizontal == even:
            return jnp.arctan2(data[..., a1], data[..., a2])
        if tait_bryan:
            return jnp.arctan2(-data[..., a2], data[..., a1])
        return jnp.arctan2(data[..., a2], -data[..., a1])

    o = (
        angle_from_tan(convention[0], convention[1], matrix[..., i2], False),
        central,
        angle_from_tan(convention[2], convention[1], matrix[..., i0, :], True),
    )
    out = jnp.stack(o, -1)
    return -jnp.degrees(out) if degrees else out


def _axis_rot(axis, angle):
    c, s = jnp.cos(angle), jnp.sin(angle)
    z, o = jnp.zeros_like(angle), jnp.ones_like(angle)
    if axis == "X":
        rows = [o, z, z, z, c, -s, z, s, c]
    elif axis == "Y":
        rows = [c, z, s, z, o, z, -s, z, c]
    else:
        rows = [c, -s, z, s, c, z, z, z, o]
    return jnp.stack(rows, -1).reshape(angle.shape + (3, 3))


if __name__ == "__main__":
    key = jax.random.PRNGKey(0)
    B, N = 2, 8
    # Proper rotation matrices from moderate random angles (keeps asin/acos well
    # inside their domain), flattened to (B, N, 9) as the module expects.
    angles = jax.random.uniform(
        key, (B, N, 3), minval=-0.45 * math.pi, maxval=0.45 * math.pi, dtype=jnp.float32
    )
    R = (
        _axis_rot("X", angles[..., 0])
        @ _axis_rot("Y", angles[..., 1])
        @ _axis_rot("Z", angles[..., 2])
    )
    rotmat = R.reshape(B, N, 9)

    # Tait-Bryan convention, degrees branch.
    fn = jax.jit(functools.partial(rotmat_to_euler, convention="XYZ", degrees=True))
    euler = jax.block_until_ready(fn(rotmat))
    ref = _ref_rotmat_to_euler(rotmat, convention="XYZ", degrees=True)
    assert euler.shape == (B, N, 3), euler.shape
    np.testing.assert_allclose(np.asarray(euler), np.asarray(ref), rtol=1e-4, atol=1e-2)

    # Proper-Euler (non-Tait-Bryan) convention, radians branch, same inputs.
    fn2 = jax.jit(functools.partial(rotmat_to_euler, convention="ZYZ", degrees=False))
    euler2 = jax.block_until_ready(fn2(rotmat))
    ref2 = _ref_rotmat_to_euler(rotmat, convention="ZYZ", degrees=False)
    np.testing.assert_allclose(np.asarray(euler2), np.asarray(ref2), rtol=1e-4, atol=1e-4)

    print("KERNEL_OK")
</pallas_src>

<mosaic_0001>
module attributes {stable_mosaic.version = 11 : i64} {
  func.func @kernel(%arg0: i32, %arg1: memref<5x16x128xf32, #tpu.memory_space<vmem>>, %arg2: memref<3x16x128xf32, #tpu.memory_space<vmem>>) attributes {dimension_semantics = [#tpu.dimension_semantics<parallel>], iteration_bounds = array<i64: 1>, scalar_prefetch = 0 : i64, scratch_operands = 0 : i64, tpu.core_type = #tpu.core_type<tc>, window_params = [{transform_indices = @transform_0, window_bounds = array<i64: 5, 16, 128>}, {transform_indices = @transform_1, window_bounds = array<i64: 3, 16, 128>}]} {
    %c4 = arith.constant 4 : index
    %c0 = arith.constant 0 : index
    %c0_0 = arith.constant 0 : index
    %0 = vector.load %arg1[%c4, %c0, %c0_0] : memref<5x16x128xf32, #tpu.memory_space<vmem>>, vector<1x16x128xf32>
    %1 = vector.shape_cast %0 : vector<1x16x128xf32> to vector<16x128xf32>
    %c3 = arith.constant 3 : index
    %c0_1 = arith.constant 0 : index
    %c0_2 = arith.constant 0 : index
    %2 = vector.load %arg1[%c3, %c0_1, %c0_2] : memref<5x16x128xf32, #tpu.memory_space<vmem>>, vector<1x16x128xf32>
    %3 = vector.shape_cast %2 : vector<1x16x128xf32> to vector<16x128xf32>
    %4 = math.atan2 %3, %1 : vector<16x128xf32>
    %c2 = arith.constant 2 : index
    %c0_3 = arith.constant 0 : index
    %c0_4 = arith.constant 0 : index
    %5 = vector.load %arg1[%c2, %c0_3, %c0_4] : memref<5x16x128xf32, #tpu.memory_space<vmem>>, vector<1x16x128xf32>
    %6 = vector.shape_cast %5 : vector<1x16x128xf32> to vector<16x128xf32>
    %cst = arith.constant 1.000000e+00 : f32
    %7 = vector.broadcast %cst : f32 to vector<16x128xf32>
    %8 = arith.subf %7, %6 : vector<16x128xf32>
    %cst_5 = arith.constant 1.000000e+00 : f32
    %9 = vector.broadcast %cst_5 : f32 to vector<16x128xf32>
    %10 = arith.addf %9, %6 : vector<16x128xf32>
    %11 = arith.mulf %8, %10 : vector<16x128xf32>
    %cst_6 = arith.constant 0.000000e+00 : f32
    %12 = vector.broadcast %cst_6 : f32 to vector<16x128xf32>
    %13 = arith.maximumf %11, %12 : vector<16x128xf32>
    %14 = math.sqrt %13 : vector<16x128xf32>
    %15 = math.atan2 %6, %14 : vector<16x128xf32>
    %c0_7 = arith.constant 0 : index
    %c0_8 = arith.constant 0 : index
    %c0_9 = arith.constant 0 : index
    %16 = vector.load %arg1[%c0_7, %c0_8, %c0_9] : memref<5x16x128xf32, #tpu.memory_space<vmem>>, vector<1x16x128xf32>
    %17 = vector.shape_cast %16 : vector<1x16x128xf32> to vector<16x128xf32>
    %c1 = arith.constant 1 : index
    %c0_10 = arith.constant 0 : index
    %c0_11 = arith.constant 0 : index
    %18 = vector.load %arg1[%c1, %c0_10, %c0_11] : memref<5x16x128xf32, #tpu.memory_space<vmem>>, vector<1x16x128xf32>
    %19 = vector.shape_cast %18 : vector<1x16x128xf32> to vector<16x128xf32>
    %20 = math.atan2 %19, %17 : vector<16x128xf32>
    %cst_12 = arith.constant 57.2957802 : f32
    %21 = vector.broadcast %cst_12 : f32 to vector<16x128xf32>
    %22 = arith.mulf %4, %21 : vector<16x128xf32>
    %c0_13 = arith.constant 0 : index
    %c0_14 = arith.constant 0 : index
    %c0_15 = arith.constant 0 : index
    %23 = vector.load %arg2[%c0_13, %c0_14, %c0_15] : memref<3x16x128xf32, #tpu.memory_space<vmem>>, vector<1x16x128xf32>
    %24 = vector.shape_cast %23 : vector<1x16x128xf32> to vector<16x128xf32>
    %25 = vector.shape_cast %22 : vector<16x128xf32> to vector<1x16x128xf32>
    tpu.vector_store %arg2[%c0_13, %c0_14, %c0_15], %25 {strides = array<i32>} : memref<3x16x128xf32, #tpu.memory_space<vmem>>, vector<1x16x128xf32>,
    %cst_16 = arith.constant -57.2957802 : f32
    %26 = vector.broadcast %cst_16 : f32 to vector<16x128xf32>
    %27 = arith.mulf %15, %26 : vector<16x128xf32>
    %c1_17 = arith.constant 1 : index
    %c0_18 = arith.constant 0 : index
    %c0_19 = arith.constant 0 : index
    %28 = vector.load %arg2[%c1_17, %c0_18, %c0_19] : memref<3x16x128xf32, #tpu.memory_space<vmem>>, vector<1x16x128xf32>
    %29 = vector.shape_cast %28 : vector<1x16x128xf32> to vector<16x128xf32>
    %30 = vector.shape_cast %27 : vector<16x128xf32> to vector<1x16x128xf32>
    tpu.vector_store %arg2[%c1_17, %c0_18, %c0_19], %30 {strides = array<i32>} : memref<3x16x128xf32, #tpu.memory_space<vmem>>, vector<1x16x128xf32>,
    %cst_20 = arith.constant 57.2957802 : f32
    %31 = vector.broadcast %cst_20 : f32 to vector<16x128xf32>
    %32 = arith.mulf %20, %31 : vector<16x128xf32>
    %c2_21 = arith.constant 2 : index
    %c0_22 = arith.constant 0 : index
    %c0_23 = arith.constant 0 : index
    %33 = vector.load %arg2[%c2_21, %c0_22, %c0_23] : memref<3x16x128xf32, #tpu.memory_space<vmem>>, vector<1x16x128xf32>
    %34 = vector.shape_cast %33 : vector<1x16x128xf32> to vector<16x128xf32>
    %35 = vector.shape_cast %32 : vector<16x128xf32> to vector<1x16x128xf32>
    tpu.vector_store %arg2[%c2_21, %c0_22, %c0_23], %35 {strides = array<i32>} : memref<3x16x128xf32, #tpu.memory_space<vmem>>, vector<1x16x128xf32>,
    return
  }
  func.func @transform_0(%arg0: i32) -> (i32, i32, i32) {
    %c0_i32 = arith.constant 0 : i32
    %c0_i32_0 = arith.constant 0 : i32
    %c0_i32_1 = arith.constant 0 : i32
    return %c0_i32, %arg0, %c0_i32_0 : i32, i32, i32
  }
  func.func @transform_1(%arg0: i32) -> (i32, i32, i32) {
    %c0_i32 = arith.constant 0 : i32
    %c0_i32_0 = arith.constant 0 : i32
    %c0_i32_1 = arith.constant 0 : i32
    return %c0_i32, %arg0, %c0_i32_0 : i32, i32, i32
  }
}

</mosaic_0001>

<llo_original>
// kernel: rotmat_to_euler.1
$region0: #{rotmat_to_euler.1}
  #allocation0 [shape = 'u32[]', space=smem, size = 0x4, offset = 0x4, fixed_abs, tag = 'smem constant byte address 0x4 - core index']
  #allocation1 [shape = 'u32[72,128]{1,0:T(1,128)}', space=vmem, size = 0x9000, scoped, tag = 'internal scratch']
  %s0 = inlined_call_operand.vmem [shape: f32[5,16,128], index: 0, kind: input, shape index: {}]
  %s1 = inlined_call_operand.vmem [shape: f32[3,16,128], index: 1, kind: output, shape index: {}]
  %s2 = sld [smem:[#allocation0]]
  $region14: #{rotmat_to_euler.1} parent=0
    _
  %s4 = ssub.s32 1, %s2
  %s5 = scalar_select 0, %s4, %s2
  // Predicated region
  $region2: #{rotmat_to_euler.1} parent=0 // pred_check
    _
  $region3: #{rotmat_to_euler.1} parent=0 // pred_check_branch
    %7 = sbr.rel (0) target = $region5
  $region4: #{rotmat_to_euler.1} parent=0 // pred_region
    _
  $region5: #{rotmat_to_euler.1} parent=0 // pred_fallthru
    _
  %s8 = scalar_lea.vmem %s0, 64
  %v9 = vld [vmem:[%s8] sm:$0xff]
  %v10 = vld [vmem:[%s8 + $0x8] sm:$0xff]
  %s11 = scalar_lea.vmem %s0, 48
  %v12 = vld [vmem:[%s11] sm:$0xff]
  %v13 = vld [vmem:[%s11 + $0x8] sm:$0xff]
  %v14 = vand.u32 2147483647, %v9
  %v15 = vand.u32 2147483647, %v12
  %v16 = vmin.f32 %v14, %v15
  %v17 = vmax.f32 %v14, %v15
  %v18 = vrcp.pop %v17
  %v19 = vmul.f32 %v17, %v18
  %v20 = vsub.f32 1.0, %v19
  %v21 = vmul.f32 %v18, %v20
  %v22 = vadd.f32 %v18, %v21
  %vm23 = vweird.f32 %v17
  %vm24 = vweird.f32 %v18
  %vm25 = vmor %vm23, %vm24
  %v26 = vsel %vm25, %v18, %v22
  %v27 = vand.u32 2147483647, %v17
  %vm28 = vcmp.eq.f32.partialorder %v27, 8.507059e+37
  %v29 = vand.u32 %v17, 2147483648
  %v30 = vor.u32 1.1754944e-38, %v29
  %v31 = vsel %vm28, %v30, %v26
  %v32 = vmul.f32 %v16, %v31
  %v33 = vmul.f32 %v32, %v32
  %v34 = vmul.f32 0.002785687, %v33
  %v35 = vadd.f32 %v34, -0.015866
  %v36 = vmul.f32 %v35, %v33
  %v37 = vadd.f32 %v36, 0.04247222
  %v38 = vmul.f32 %v37, %v33
  %v39 = vadd.f32 %v38, -0.074975304
  %v40 = vmul.f32 %v39, %v33
  %v41 = vadd.f32 %v40, 0.1064488
  %v42 = vmul.f32 %v41, %v33
  %v43 = vadd.f32 %v42, -0.14207031
  %v44 = vmul.f32 %v43, %v33
  %v45 = vadd.f32 %v44, 0.19993454
  %v46 = vmul.f32 %v45, %v33
  %v47 = vadd.f32 %v46, -0.33333147
  %v48 = vmul.f32 %v47, %v33
  %v49 = vmul.f32 %v48, %v32
  %v50 = vadd.f32 %v49, %v32
  %vm51 = vcmp.gt.f32.partialorder %v15, %v14
  %v52 = vsub.f32 1.5707964, %v50
  %v53 = vsel %vm51, %v52, %v50
  %vm54 = vcmp.lt.f32.partialorder %v9, 0.0
  %v55 = vsub.f32 3.1415927, %v53
  %v56 = vsel %vm54, %v55, %v53
  %vm57 = vcmp.lt.s32.totalorder %v9, 0
  %v58 = vsel %vm57, 3.1415927, 0.0
  %vm59 = vcmp.eq.f32.partialorder %v12, 0.0
  %v60 = vsel %vm59, %v58, %v56
  %vm61 = vcmp.ne.f32.partialorder %v9, %v9
  %vm62 = vcmp.ne.f32.partialorder %v12, %v12
  %vm63 = vmor %vm61, %vm62
  %v64 = vsel %vm63, nan, %v60
  %vm65 = vcmp.lt.f32.partialorder %v9, 0.0
  %v66 = vsel %vm65, 2.3561945, 0.7853982
  %vm67 = vcmp.eq.s32.totalorder %v14, inf
  %vm68 = vcmp.eq.s32.totalorder %v15, inf
  %vm69 = vmand %vm67, %vm68
  %v70 = vsel %vm69, %v66, %v64
  %v71 = vand.u32 2147483647, %v70
  %v72 = vand.u32 %v12, 2147483648
  %v73 = vor.u32 %v71, %v72
  %v74 = vand.u32 2147483647, %v10
  %v75 = vand.u32 2147483647, %v13
  %v76 = vmin.f32 %v74, %v75
  %v77 = vmax.f32 %v74, %v75
  %v78 = vrcp.pop %v77
  %v79 = vmul.f32 %v77, %v78
  %v80 = vsub.f32 1.0, %v79
  %v81 = vmul.f32 %v78, %v80
  %v82 = vadd.f32 %v78, %v81
  %vm83 = vweird.f32 %v77
  %vm84 = vweird.f32 %v78
  %vm85 = vmor %vm83, %vm84
  %v86 = vsel %vm85, %v78, %v82
  %v87 = vand.u32 2147483647, %v77
  %vm88 = vcmp.eq.f32.partialorder %v87, 8.507059e+37
  %v89 = vand.u32 %v77, 2147483648
  %v90 = vor.u32 1.1754944e-38, %v89
  %v91 = vsel %vm88, %v90, %v86
  %v92 = vmul.f32 %v76, %v91
  %v93 = vmul.f32 %v92, %v92
  %v94 = vmul.f32 0.002785687, %v93
  %v95 = vadd.f32 %v94, -0.015866
  %v96 = vmul.f32 %v95, %v93
  %v97 = vadd.f32 %v96, 0.04247222
  %v98 = vmul.f32 %v97, %v93
  %v99 = vadd.f32 %v98, -0.074975304
  %v100 = vmul.f32 %v99, %v93
  %v101 = vadd.f32 %v100, 0.1064488
  %v102 = vmul.f32 %v101, %v93
  %v103 = vadd.f32 %v102, -0.14207031
  %v104 = vmul.f32 %v103, %v93
  %v105 = vadd.f32 %v104, 0.19993454
  %v106 = vmul.f32 %v105, %v93
  %v107 = vadd.f32 %v106, -0.33333147
  %v108 = vmul.f32 %v107, %v93
  %v109 = vmul.f32 %v108, %v92
  %v110 = vadd.f32 %v109, %v92
  %vm111 = vcmp.gt.f32.partialorder %v75, %v74
  %v112 = vsub.f32 1.5707964, %v110
  %v113 = vsel %vm111, %v112, %v110
  %vm114 = vcmp.lt.f32.partialorder %v10, 0.0
  %v115 = vsub.f32 3.1415927, %v113
  %v116 = vsel %vm114, %v115, %v113
  %vm117 = vcmp.lt.s32.totalorder %v10, 0
  %v118 = vsel %vm117, 3.1415927, 0.0
  %vm119 = vcmp.eq.f32.partialorder %v13, 0.0
  %v120 = vsel %vm119, %v118, %v116
  %vm121 = vcmp.ne.f32.partialorder %v10, %v10
  %vm122 = vcmp.ne.f32.partialorder %v13, %v13
  %vm123 = vmor %vm121, %vm122
  %v124 = vsel %vm123, nan, %v120
  %vm125 = vcmp.lt.f32.partialorder %v10, 0.0
  %v126 = vsel %vm125, 2.3561945, 0.7853982
  %vm127 = vcmp.eq.s32.totalorder %v74, inf
  %vm128 = vcmp.eq.s32.totalorder %v75, inf
  %vm129 = vmand %vm127, %vm128
  %v130 = vsel %vm129, %v126, %v124
  %v131 = vand.u32 2147483647, %v130
  %v132 = vand.u32 %v13, 2147483648
  %v133 = vor.u32 %v131, %v132
  %s134 = scalar_lea.vmem %s0, 32
  %v135 = vld [vmem:[%s134] sm:$0xff]
  %v136 = vld [vmem:[%s134 + $0x8] sm:$0xff]
  %v137 = vsub.f32 1.0, %v135
  %v138 = vsub.f32 1.0, %v136
  %v139 = vadd.f32 %v135, 1.0
  %v140 = vadd.f32 %v136, 1.0
  %v141 = vmul.f32 %v137, %v139
  %v142 = vmul.f32 %v138, %v140
  %v143 = vmax.f32 %v141, 0.0
  %v144 = vmax.f32 %v142, 0.0
  %v145 = vrsqrt.pop %v143
  %v146 = vmul.f32 %v145, %v143
  %v147 = vmul.f32 %v146, %v145
  %v148 = vmul.f32 0.5, %v147
  %v149 = vsub.f32 1.5, %v148
  %v150 = vmul.f32 %v145, %v149
  %v151 = vmul.f32 %v143, %v150
  %vm152 = vcmp.eq.f32.partialorder %v143, inf
  %v153 = vsel %vm152, %v143, %v151
  %vm154 = vcmp.eq.f32.partialorder %v143, 0.0
  %v155 = vand.u32 %v143, 2147483648
  %v156 = vsel %vm154, %v155, %v153
  %v157 = vrsqrt.pop %v144
  %v158 = vmul.f32 %v157, %v144
  %v159 = vmul.f32 %v158, %v157
  %v160 = vmul.f32 0.5, %v159
  %v161 = vsub.f32 1.5, %v160
  %v162 = vmul.f32 %v157, %v161
  %v163 = vmul.f32 %v144, %v162
  %vm164 = vcmp.eq.f32.partialorder %v144, inf
  %v165 = vsel %vm164, %v144, %v163
  %vm166 = vcmp.eq.f32.partialorder %v144, 0.0
  %v167 = vand.u32 %v144, 2147483648
  %v168 = vsel %vm166, %v167, %v165
  %v169 = vand.u32 2147483647, %v156
  %v170 = vand.u32 2147483647, %v135
  %v171 = vmin.f32 %v169, %v170
  %v172 = vmax.f32 %v169, %v170
  %v173 = vrcp.pop %v172
  %v174 = vmul.f32 %v172, %v173
  %v175 = vsub.f32 1.0, %v174
  %v176 = vmul.f32 %v173, %v175
  %v177 = vadd.f32 %v173, %v176
  %vm178 = vweird.f32 %v172
  %vm179 = vweird.f32 %v173
  %vm180 = vmor %vm178, %vm179
  %v181 = vsel %vm180, %v173, %v177
  %v182 = vand.u32 2147483647, %v172
  %vm183 = vcmp.eq.f32.partialorder %v182, 8.507059e+37
  %v184 = vand.u32 %v172, 2147483648
  %v185 = vor.u32 1.1754944e-38, %v184
  %v186 = vsel %vm183, %v185, %v181
  %v187 = vmul.f32 %v171, %v186
  %v188 = vmul.f32 %v187, %v187
  %v189 = vmul.f32 0.002785687, %v188
  %v190 = vadd.f32 %v189, -0.015866
  %v191 = vmul.f32 %v190, %v188
  %v192 = vadd.f32 %v191, 0.04247222
  %v193 = vmul.f32 %v192, %v188
  %v194 = vadd.f32 %v193, -0.074975304
  %v195 = vmul.f32 %v194, %v188
  %v196 = vadd.f32 %v195, 0.1064488
  %v197 = vmul.f32 %v196, %v188
  %v198 = vadd.f32 %v197, -0.14207031
  %v199 = vmul.f32 %v198, %v188
  %v200 = vadd.f32 %v199, 0.19993454
  %v201 = vmul.f32 %v200, %v188
  %v202 = vadd.f32 %v201, -0.33333147
  %v203 = vmul.f32 %v202, %v188
  %v204 = vmul.f32 %v203, %v187
  %v205 = vadd.f32 %v204, %v187
  %vm206 = vcmp.gt.f32.partialorder %v170, %v169
  %v207 = vsub.f32 1.5707964, %v205
  %v208 = vsel %vm206, %v207, %v205
  %vm209 = vcmp.lt.f32.partialorder %v156, 0.0
  %v210 = vsub.f32 3.1415927, %v208
  %v211 = vsel %vm209, %v210, %v208
  %vm212 = vcmp.lt.s32.totalorder %v156, 0
  %v213 = vsel %vm212, 3.1415927, 0.0
  %vm214 = vcmp.eq.f32.partialorder %v135, 0.0
  %v215 = vsel %vm214, %v213, %v211
  %vm216 = vcmp.ne.f32.partialorder %v156, %v156
  %vm217 = vcmp.ne.f32.partialorder %v135, %v135
  %vm218 = vmor %vm216, %vm217
  %v219 = vsel %vm218, nan, %v215
  %vm220 = vcmp.lt.f32.partialorder %v156, 0.0
  %v221 = vsel %vm220, 2.3561945, 0.7853982
  %vm222 = vcmp.eq.s32.totalorder %v169, inf
  %vm223 = vcmp.eq.s32.totalorder %v170, inf
  %vm224 = vmand %vm222, %vm223
  %v225 = vsel %vm224, %v221, %v219
  %v226 = vand.u32 2147483647, %v225
  %v227 = vand.u32 %v135, 2147483648
  %v228 = vor.u32 %v226, %v227
  %v229 = vand.u32 2147483647, %v168
  %v230 = vand.u32 2147483647, %v136
  %v231 = vmin.f32 %v229, %v230
  %v232 = vmax.f32 %v229, %v230
  %v233 = vrcp.pop %v232
  %v234 = vmul.f32 %v232, %v233
  %v235 = vsub.f32 1.0, %v234
  %v236 = vmul.f32 %v233, %v235
  %v237 = vadd.f32 %v233, %v236
  %vm238 = vweird.f32 %v232
  %vm239 = vweird.f32 %v233
  %vm240 = vmor %vm238, %vm239
  %v241 = vsel %vm240, %v233, %v237
  %v242 = vand.u32 2147483647, %v232
  %vm243 = vcmp.eq.f32.partialorder %v242, 8.507059e+37
  %v244 = vand.u32 %v232, 2147483648
  %v245 = vor.u32 1.1754944e-38, %v244
  %v246 = vsel %vm243, %v245, %v241
  %v247 = vmul.f32 %v231, %v246
  %v248 = vmul.f32 %v247, %v247
  %v249 = vmul.f32 0.002785687, %v248
  %v250 = vadd.f32 %v249, -0.015866
  %v251 = vmul.f32 %v250, %v248
  %v252 = vadd.f32 %v251, 0.04247222
  %v253 = vmul.f32 %v252, %v248
  %v254 = vadd.f32 %v253, -0.074975304
  %v255 = vmul.f32 %v254, %v248
  %v256 = vadd.f32 %v255, 0.1064488
  %v257 = vmul.f32 %v256, %v248
  %v258 = vadd.f32 %v257, -0.14207031
  %v259 = vmul.f32 %v258, %v248
  %v260 = vadd.f32 %v259, 0.19993454
  %v261 = vmul.f32 %v260, %v248
  %v262 = vadd.f32 %v261, -0.33333147
  %v263 = vmul.f32 %v262, %v248
  %v264 = vmul.f32 %v263, %v247
  %v265 = vadd.f32 %v264, %v247
  %vm266 = vcmp.gt.f32.partialorder %v230, %v229
  %v267 = vsub.f32 1.5707964, %v265
  %v268 = vsel %vm266, %v267, %v265
  %vm269 = vcmp.lt.f32.partialorder %v168, 0.0
  %v270 = vsub.f32 3.1415927, %v268
  %v271 = vsel %vm269, %v270, %v268
  %vm272 = vcmp.lt.s32.totalorder %v168, 0
  %v273 = vsel %vm272, 3.1415927, 0.0
  %vm274 = vcmp.eq.f32.partialorder %v136, 0.0
  %v275 = vsel %vm274, %v273, %v271
  %vm276 = vcmp.ne.f32.partialorder %v168, %v168
  %vm277 = vcmp.ne.f32.partialorder %v136, %v136
  %vm278 = vmor %vm276, %vm277
  %v279 = vsel %vm278, nan, %v275
  %vm280 = vcmp.lt.f32.partialorder %v168, 0.0
  %v281 = vsel %vm280, 2.3561945, 0.7853982
  %vm282 = vcmp.eq.s32.totalorder %v229, inf
  %vm283 = vcmp.eq.s32.totalorder %v230, inf
  %vm284 = vmand %vm282, %vm283
  %v285 = vsel %vm284, %v281, %v279
  %v286 = vand.u32 2147483647, %v285
  %v287 = vand.u32 %v136, 2147483648
  %v288 = vor.u32 %v286, %v287
  %v289 = vld [vmem:[%s0] sm:$0xff]
  %v290 = vld [vmem:[%s0 + $0x8] sm:$0xff]
  %s291 = scalar_lea.vmem %s0, 16
  %v292 = vld [vmem:[%s291] sm:$0xff]
  %v293 = vld [vmem:[%s291 + $0x8] sm:$0xff]
  %v294 = vand.u32 2147483647, %v289
  %v295 = vand.u32 2147483647, %v292
  %v296 = vmin.f32 %v294, %v295
  %v297 = vmax.f32 %v294, %v295
  %v298 = vrcp.pop %v297
  %v299 = vmul.f32 %v297, %v298
  %v300 = vsub.f32 1.0, %v299
  %v301 = vmul.f32 %v298, %v300
  %v302 = vadd.f32 %v298, %v301
  %vm303 = vweird.f32 %v297
  %vm304 = vweird.f32 %v298
  %vm305 = vmor %vm303, %vm304
  %v306 = vsel %vm305, %v298, %v302
  %v307 = vand.u32 2147483647, %v297
  %vm308 = vcmp.eq.f32.partialorder %v307, 8.507059e+37
  %v309 = vand.u32 %v297, 2147483648
  %v310 = vor.u32 1.1754944e-38, %v309
  %v311 = vsel %vm308, %v310, %v306
  %v312 = vmul.f32 %v296, %v311
  %v313 = vmul.f32 %v312, %v312
  %v314 = vmul.f32 0.002785687, %v313
  %v315 = vadd.f32 %v314, -0.015866
  %v316 = vmul.f32 %v315, %v313
  %v317 = vadd.f32 %v316, 0.04247222
  %v318 = vmul.f32 %v317, %v313
  %v319 = vadd.f32 %v318, -0.074975304
  %v320 = vmul.f32 %v319, %v313
  %v321 = vadd.f32 %v320, 0.1064488
  %v322 = vmul.f32 %v321, %v313
  %v323 = vadd.f32 %v322, -0.14207031
  %v324 = vmul.f32 %v323, %v313
  %v325 = vadd.f32 %v324, 0.19993454
  %v326 = vmul.f32 %v325, %v313
  %v327 = vadd.f32 %v326, -0.33333147
  %v328 = vmul.f32 %v327, %v313
  %v329 = vmul.f32 %v328, %v312
  %v330 = vadd.f32 %v329, %v312
  %vm331 = vcmp.gt.f32.partialorder %v295, %v294
  %v332 = vsub.f32 1.5707964, %v330
  %v333 = vsel %vm331, %v332, %v330
  %vm334 = vcmp.lt.f32.partialorder %v289, 0.0
  %v335 = vsub.f32 3.1415927, %v333
  %v336 = vsel %vm334, %v335, %v333
  %vm337 = vcmp.lt.s32.totalorder %v289, 0
  %v338 = vsel %vm337, 3.1415927, 0.0
  %vm339 = vcmp.eq.f32.partialorder %v292, 0.0
  %v340 = vsel %vm339, %v338, %v336
  %vm341 = vcmp.ne.f32.partialorder %v289, %v289
  %vm342 = vcmp.ne.f32.partialorder %v292, %v292
  %vm343 = vmor %vm341, %vm342
  %v344 = vsel %vm343, nan, %v340
  %vm345 = vcmp.lt.f32.partialorder %v289, 0.0
  %v346 = vsel %vm345, 2.3561945, 0.7853982
  %vm347 = vcmp.eq.s32.totalorder %v294, inf
  %vm348 = vcmp.eq.s32.totalorder %v295, inf
  %vm349 = vmand %vm347, %vm348
  %v350 = vsel %vm349, %v346, %v344
  %v351 = vand.u32 2147483647, %v350
  %v352 = vand.u32 %v292, 2147483648
  %v353 = vor.u32 %v351, %v352
  %v354 = vand.u32 2147483647, %v290
  %v355 = vand.u32 2147483647, %v293
  %v356 = vmin.f32 %v354, %v355
  %v357 = vmax.f32 %v354, %v355
  %v358 = vrcp.pop %v357
  %v359 = vmul.f32 %v357, %v358
  %v360 = vsub.f32 1.0, %v359
  %v361 = vmul.f32 %v358, %v360
  %v362 = vadd.f32 %v358, %v361
  %vm363 = vweird.f32 %v357
  %vm364 = vweird.f32 %v358
  %vm365 = vmor %vm363, %vm364
  %v366 = vsel %vm365, %v358, %v362
  %v367 = vand.u32 2147483647, %v357
  %vm368 = vcmp.eq.f32.partialorder %v367, 8.507059e+37
  %v369 = vand.u32 %v357, 2147483648
  %v370 = vor.u32 1.1754944e-38, %v369
  %v371 = vsel %vm368, %v370, %v366
  %v372 = vmul.f32 %v356, %v371
  %v373 = vmul.f32 %v372, %v372
  %v374 = vmul.f32 0.002785687, %v373
  %v375 = vadd.f32 %v374, -0.015866
  %v376 = vmul.f32 %v375, %v373
  %v377 = vadd.f32 %v376, 0.04247222
  %v378 = vmul.f32 %v377, %v373
  %v379 = vadd.f32 %v378, -0.074975304
  %v380 = vmul.f32 %v379, %v373
  %v381 = vadd.f32 %v380, 0.1064488
  %v382 = vmul.f32 %v381, %v373
  %v383 = vadd.f32 %v382, -0.14207031
  %v384 = vmul.f32 %v383, %v373
  %v385 = vadd.f32 %v384, 0.19993454
  %v386 = vmul.f32 %v385, %v373
  %v387 = vadd.f32 %v386, -0.33333147
  %v388 = vmul.f32 %v387, %v373
  %v389 = vmul.f32 %v388, %v372
  %v390 = vadd.f32 %v389, %v372
  %vm391 = vcmp.gt.f32.partialorder %v355, %v354
  %v392 = vsub.f32 1.5707964, %v390
  %v393 = vsel %vm391, %v392, %v390
  %vm394 = vcmp.lt.f32.partialorder %v290, 0.0
  %v395 = vsub.f32 3.1415927, %v393
  %v396 = vsel %vm394, %v395, %v393
  %vm397 = vcmp.lt.s32.totalorder %v290, 0
  %v398 = vsel %vm397, 3.1415927, 0.0
  %vm399 = vcmp.eq.f32.partialorder %v293, 0.0
  %v400 = vsel %vm399, %v398, %v396
  %vm401 = vcmp.ne.f32.partialorder %v290, %v290
  %vm402 = vcmp.ne.f32.partialorder %v293, %v293
  %vm403 = vmor %vm401, %vm402
  %v404 = vsel %vm403, nan, %v400
  %vm405 = vcmp.lt.f32.partialorder %v290, 0.0
  %v406 = vsel %vm405, 2.3561945, 0.7853982
  %vm407 = vcmp.eq.s32.totalorder %v354, inf
  %vm408 = vcmp.eq.s32.totalorder %v355, inf
  %vm409 = vmand %vm407, %vm408
  %v410 = vsel %vm409, %v406, %v404
  %v411 = vand.u32 2147483647, %v410
  %v412 = vand.u32 %v293, 2147483648
  %v413 = vor.u32 %v411, %v412
  %v414 = vmul.f32 %v73, 57.29578
  %v415 = vmul.f32 %v133, 57.29578
  %416 = vst [vmem:[%s1] sm:$0xff] %v414
  %417 = vst [vmem:[%s1 + $0x8] sm:$0xff] %v415
  %v418 = vmul.f32 %v228, -57.29578
  %v419 = vmul.f32 %v288, -57.29578
  %s420 = scalar_lea.vmem %s1, 16
  %421 = vst [vmem:[%s420] sm:$0xff] %v418
  %422 = vst [vmem:[%s420 + $0x8] sm:$0xff] %v419
  %v423 = vmul.f32 %v353, 57.29578
  %v424 = vmul.f32 %v413, 57.29578
  %s425 = scalar_lea.vmem %s1, 32
  %426 = vst [vmem:[%s425] sm:$0xff] %v423
  %427 = vst [vmem:[%s425 + $0x8] sm:$0xff] %v424
  // Predicated region
  $region6: #{rotmat_to_euler.1} parent=0 // pred_check
    _
  $region7: #{rotmat_to_euler.1} parent=0 // pred_check_branch
    %429 = sbr.rel (0) target = $region9
  $region8: #{rotmat_to_euler.1} parent=0 // pred_region
    _
  $region9: #{rotmat_to_euler.1} parent=0 // pred_fallthru
    _
  // Predicated region
  $region10: #{rotmat_to_euler.1} parent=0 // pred_check
    _
  $region11: #{rotmat_to_euler.1} parent=0 // pred_check_branch
    %431 = sbr.rel (0) target = $region13
  $region12: #{rotmat_to_euler.1} parent=0 // pred_region
    _
  $region13: #{rotmat_to_euler.1} parent=0 // pred_fallthru
    _

</llo_original>
